<compile_context>
chip_gen: v5e
topology: v5e:2x2
jax: 0.10.0
libtpu: 0.0.40
codegen_flags: <defaults>
</compile_context>

<pallas_src>
import jax
import jax.numpy as jnp
from jax.experimental import pallas as pl
from jax.experimental.pallas import tpu as pltpu

_LANE = 128
_SUBLANE = 8


def _conv1x1_kernel(w_ref, b_ref, x_ref, o_ref):
    # w_ref: (Cout, Cin)      f32 in SMEM (scalar reads)
    # b_ref: (Cout,)          f32 in SMEM
    # x_ref: (Cin,  R, 128)   in VMEM  (batch dim squeezed away)
    # o_ref: (Cout, R, 128)   in VMEM  (dense sublane x lane slabs)
    cout, cin = w_ref.shape
    x = x_ref[...].astype(jnp.float32)            # (Cin, R, 128), loaded once
    for o in range(cout):                         # tiny static loops -> VPU FMAs
        acc = x[0] * w_ref[o, 0]
        for c in range(1, cin):
            acc = acc + x[c] * w_ref[o, c]
        # Direct per-channel store: no concatenate / sublane shuffles.
        o_ref[o] = (acc + b_ref[o]).astype(o_ref.dtype)


def _working_set_budget_bytes() -> int:
    """Per-generation budget for the double-buffered pipeline working set."""
    default_budget = 12 << 20  # ~12 MiB: safe on v5e/v6e/v7x scoped VMEM
    try:
        info = pltpu.get_tpu_info()
        vmem = getattr(info, "vmem_capacity_bytes", None)
        if vmem:
            # Keep the pipeline well under physical VMEM (v7x: 64 MiB total).
            return min(int(vmem) // 5, default_budget)
    except Exception:
        pass
    return default_budget


def _pick_row_tile(rows_total: int, cin: int, cout: int, budget_bytes: int) -> int:
    """Rows of 128 pixels per grid step (multiple of 8 unless full extent)."""
    bytes_per_row = (cin + cout) * _LANE * 4 * 2   # f32, double-buffered x + out
    max_rows = max(budget_bytes // bytes_per_row, _SUBLANE)
    if rows_total <= max_rows:
        return rows_total                           # whole pixel axis in one block
    return max((max_rows // _SUBLANE) * _SUBLANE, _SUBLANE)


def conv1x1_nchw(x, weight, bias):
    """1x1 conv matching torch.nn.Conv2d(kernel_size=1, padding=0), NCHW.

    x:      (N, Cin, H, W)  float32
    weight: (Cout, Cin)     float32  (1x1 kernel squeezed)
    bias:   (Cout,)         float32
    returns (N, Cout, H, W) float32
    """
    N, Cin, H, W = x.shape
    Cout, Cin_w = weight.shape
    assert Cin_w == Cin
    HW = H * W

    rows_total = pl.cdiv(HW, _LANE)
    tile_rows = _pick_row_tile(rows_total, Cin, Cout, _working_set_budget_bytes())
    rows_padded = pl.cdiv(rows_total, tile_rows) * tile_rows
    padded_hw = rows_padded * _LANE

    # Free reshape (HW is contiguous in NCHW); pad ragged pixel tail with zeros.
    x3 = x.reshape(N, Cin, HW)
    if padded_hw != HW:
        x3 = jnp.pad(x3, ((0, 0), (0, 0), (0, padded_hw - HW)))
    x4 = x3.reshape(N, Cin, rows_padded, _LANE)

    grid = (N, rows_padded // tile_rows)

    cost = pl.CostEstimate(
        flops=2 * N * Cout * Cin * HW,
        transcendentals=0,
        bytes_accessed=N * (Cin + Cout) * HW * 4,
    )

    out4 = pl.pallas_call(
        _conv1x1_kernel,
        out_shape=jax.ShapeDtypeStruct((N, Cout, rows_padded, _LANE), x.dtype),
        grid_spec=pltpu.PrefetchScalarGridSpec(
            num_scalar_prefetch=0,
            grid=grid,
            in_specs=[
                # Tiny weight / bias live in SMEM: scalar broadcasts, no VMEM
                # tiles, no per-step DMA streams for them.
                pl.BlockSpec(memory_space=pltpu.MemorySpace.SMEM),
                pl.BlockSpec(memory_space=pltpu.MemorySpace.SMEM),
                # x block: batch squeezed, channels full, dense (R, 128) pixels.
                pl.BlockSpec((None, Cin, tile_rows, _LANE),
                             lambda n, p: (n, 0, p, 0)),
            ],
            out_specs=pl.BlockSpec((None, Cout, tile_rows, _LANE),
                                   lambda n, p: (n, 0, p, 0)),
        ),
        compiler_params=pltpu.CompilerParams(
            dimension_semantics=("parallel", "parallel"),
            vmem_limit_bytes=32 << 20,
        ),
        cost_estimate=cost,
    )(weight, bias, x4)

    # Free reshape back; drop pixel padding.
    out3 = out4.reshape(N, Cout, padded_hw)
    if padded_hw != HW:
        out3 = out3[:, :, :HW]
    return out3.reshape(N, Cout, H, W)


class SegmentationTestModel:
    """JAX/Pallas port of the torch module (conv1 = Conv2d(in, classes, k=1))."""

    def __init__(self, in_channels: int = 3, classes: int = 3, *, key=None):
        if key is None:
            key = jax.random.PRNGKey(0)
        kw, kb = jax.random.split(key)
        # Deterministic init mimicking torch's default uniform(-1/sqrt(fan_in), ...).
        fan_in = in_channels * 1 * 1
        bound = 1.0 / (fan_in ** 0.5)
        self.weight = jax.random.uniform(
            kw, (classes, in_channels), jnp.float32, -bound, bound)
        self.bias = jax.random.uniform(
            kb, (classes,), jnp.float32, -bound, bound)

    def __call__(self, x):
        return conv1x1_nchw(x, self.weight, self.bias)


if __name__ == "__main__":
    key = jax.random.PRNGKey(0)
    k_x, k_p = jax.random.split(key)

    # Small shapes consistent with the module: batch=2, in_channels=3, 16x16.
    x = jax.random.normal(k_x, (2, 3, 16, 16), jnp.float32)

    model = SegmentationTestModel(in_channels=3, classes=3, key=k_p)
    out = model(x)
    out = jax.block_until_ready(out)

    # Sanity check vs. pure-JAX reference (einsum over channel dim).
    ref = jnp.einsum("nchw,oc->nohw", x, model.weight) + model.bias[None, :, None, None]
    assert out.shape == (2, 3, 16, 16)
    assert jnp.allclose(out, ref, atol=1e-5, rtol=1e-5)

    print("KERNEL_OK")
</pallas_src>

<mosaic_0001>
module attributes {stable_mosaic.version = 11 : i64} {
  func.func @_conv1x1_kernel(%arg0: i32, %arg1: i32, %arg2: memref<3x3xf32, #tpu.memory_space<smem>>, %arg3: memref<3xf32, #tpu.memory_space<smem>>, %arg4: memref<1x3x2x128xf32, #tpu.memory_space<vmem>>, %arg5: memref<1x3x2x128xf32, #tpu.memory_space<vmem>>) attributes {dimension_semantics = [#tpu.dimension_semantics<parallel>, #tpu.dimension_semantics<parallel>], iteration_bounds = array<i64: 2, 1>, scalar_prefetch = 0 : i64, scratch_operands = 0 : i64, tpu.core_type = #tpu.core_type<tc>, window_params = [{transform_indices = @transform_0, window_bounds = array<i64: 3, 3>}, {transform_indices = @transform_1, window_bounds = array<i64: 3>}, {transform_indices = @transform_2, window_bounds = array<i64: 1, 3, 2, 128>}, {transform_indices = @transform_3, window_bounds = array<i64: 1, 3, 2, 128>}]} {
    %c0 = arith.constant 0 : index
    %c0_0 = arith.constant 0 : index
    %c0_1 = arith.constant 0 : index
    %c0_2 = arith.constant 0 : index
    %0 = vector.load %arg4[%c0, %c0_0, %c0_1, %c0_2] : memref<1x3x2x128xf32, #tpu.memory_space<vmem>>, vector<1x3x2x128xf32>
    %1 = vector.shape_cast %0 : vector<1x3x2x128xf32> to vector<3x2x128xf32>
    %2 = vector.extract_strided_slice %1 {offsets = [0, 0, 0], sizes = [1, 2, 128], strides = [1, 1, 1]} : vector<3x2x128xf32> to vector<1x2x128xf32>
    %3 = vector.shape_cast %2 : vector<1x2x128xf32> to vector<2x128xf32>
    %c0_3 = arith.constant 0 : index
    %c0_4 = arith.constant 0 : index
    %4 = memref.load %arg2[%c0_3, %c0_4] : memref<3x3xf32, #tpu.memory_space<smem>>
    %5 = vector.broadcast %4 : f32 to vector<2x128xf32>
    %6 = arith.mulf %3, %5 : vector<2x128xf32>
    %7 = vector.extract_strided_slice %1 {offsets = [1, 0, 0], sizes = [1, 2, 128], strides = [1, 1, 1]} : vector<3x2x128xf32> to vector<1x2x128xf32>
    %8 = vector.shape_cast %7 : vector<1x2x128xf32> to vector<2x128xf32>
    %c0_5 = arith.constant 0 : index
    %c1 = arith.constant 1 : index
    %9 = memref.load %arg2[%c0_5, %c1] : memref<3x3xf32, #tpu.memory_space<smem>>
    %10 = vector.broadcast %9 : f32 to vector<2x128xf32>
    %11 = arith.mulf %8, %10 : vector<2x128xf32>
    %12 = arith.addf %6, %11 : vector<2x128xf32>
    %13 = vector.extract_strided_slice %1 {offsets = [2, 0, 0], sizes = [1, 2, 128], strides = [1, 1, 1]} : vector<3x2x128xf32> to vector<1x2x128xf32>
    %14 = vector.shape_cast %13 : vector<1x2x128xf32> to vector<2x128xf32>
    %c0_6 = arith.constant 0 : index
    %c2 = arith.constant 2 : index
    %15 = memref.load %arg2[%c0_6, %c2] : memref<3x3xf32, #tpu.memory_space<smem>>
    %16 = vector.broadcast %15 : f32 to vector<2x128xf32>
    %17 = arith.mulf %14, %16 : vector<2x128xf32>
    %18 = arith.addf %12, %17 : vector<2x128xf32>
    %c0_7 = arith.constant 0 : index
    %19 = memref.load %arg3[%c0_7] : memref<3xf32, #tpu.memory_space<smem>>
    %20 = vector.broadcast %19 : f32 to vector<2x128xf32>
    %21 = arith.addf %18, %20 : vector<2x128xf32>
    %c0_8 = arith.constant 0 : index
    %c0_9 = arith.constant 0 : index
    %c0_10 = arith.constant 0 : index
    %c0_11 = arith.constant 0 : index
    %22 = vector.load %arg5[%c0_8, %c0_9, %c0_10, %c0_11] : memref<1x3x2x128xf32, #tpu.memory_space<vmem>>, vector<1x1x2x128xf32>
    %23 = vector.shape_cast %22 : vector<1x1x2x128xf32> to vector<2x128xf32>
    %24 = vector.shape_cast %21 : vector<2x128xf32> to vector<1x1x2x128xf32>
    tpu.vector_store %arg5[%c0_8, %c0_9, %c0_10, %c0_11], %24 {strides = array<i32>} : memref<1x3x2x128xf32, #tpu.memory_space<vmem>>, vector<1x1x2x128xf32>,
    %25 = vector.extract_strided_slice %1 {offsets = [0, 0, 0], sizes = [1, 2, 128], strides = [1, 1, 1]} : vector<3x2x128xf32> to vector<1x2x128xf32>
    %26 = vector.shape_cast %25 : vector<1x2x128xf32> to vector<2x128xf32>
    %c1_12 = arith.constant 1 : index
    %c0_13 = arith.constant 0 : index
    %27 = memref.load %arg2[%c1_12, %c0_13] : memref<3x3xf32, #tpu.memory_space<smem>>
    %28 = vector.broadcast %27 : f32 to vector<2x128xf32>
    %29 = arith.mulf %26, %28 : vector<2x128xf32>
    %30 = vector.extract_strided_slice %1 {offsets = [1, 0, 0], sizes = [1, 2, 128], strides = [1, 1, 1]} : vector<3x2x128xf32> to vector<1x2x128xf32>
    %31 = vector.shape_cast %30 : vector<1x2x128xf32> to vector<2x128xf32>
    %c1_14 = arith.constant 1 : index
    %c1_15 = arith.constant 1 : index
    %32 = memref.load %arg2[%c1_14, %c1_15] : memref<3x3xf32, #tpu.memory_space<smem>>
    %33 = vector.broadcast %32 : f32 to vector<2x128xf32>
    %34 = arith.mulf %31, %33 : vector<2x128xf32>
    %35 = arith.addf %29, %34 : vector<2x128xf32>
    %36 = vector.extract_strided_slice %1 {offsets = [2, 0, 0], sizes = [1, 2, 128], strides = [1, 1, 1]} : vector<3x2x128xf32> to vector<1x2x128xf32>
    %37 = vector.shape_cast %36 : vector<1x2x128xf32> to vector<2x128xf32>
    %c1_16 = arith.constant 1 : index
    %c2_17 = arith.constant 2 : index
    %38 = memref.load %arg2[%c1_16, %c2_17] : memref<3x3xf32, #tpu.memory_space<smem>>
    %39 = vector.broadcast %38 : f32 to vector<2x128xf32>
    %40 = arith.mulf %37, %39 : vector<2x128xf32>
    %41 = arith.addf %35, %40 : vector<2x128xf32>
    %c1_18 = arith.constant 1 : index
    %42 = memref.load %arg3[%c1_18] : memref<3xf32, #tpu.memory_space<smem>>
    %43 = vector.broadcast %42 : f32 to vector<2x128xf32>
    %44 = arith.addf %41, %43 : vector<2x128xf32>
    %c0_19 = arith.constant 0 : index
    %c1_20 = arith.constant 1 : index
    %c0_21 = arith.constant 0 : index
    %c0_22 = arith.constant 0 : index
    %45 = vector.load %arg5[%c0_19, %c1_20, %c0_21, %c0_22] : memref<1x3x2x128xf32, #tpu.memory_space<vmem>>, vector<1x1x2x128xf32>
    %46 = vector.shape_cast %45 : vector<1x1x2x128xf32> to vector<2x128xf32>
    %47 = vector.shape_cast %44 : vector<2x128xf32> to vector<1x1x2x128xf32>
    tpu.vector_store %arg5[%c0_19, %c1_20, %c0_21, %c0_22], %47 {strides = array<i32>} : memref<1x3x2x128xf32, #tpu.memory_space<vmem>>, vector<1x1x2x128xf32>,
    %48 = vector.extract_strided_slice %1 {offsets = [0, 0, 0], sizes = [1, 2, 128], strides = [1, 1, 1]} : vector<3x2x128xf32> to vector<1x2x128xf32>
    %49 = vector.shape_cast %48 : vector<1x2x128xf32> to vector<2x128xf32>
    %c2_23 = arith.constant 2 : index
    %c0_24 = arith.constant 0 : index
    %50 = memref.load %arg2[%c2_23, %c0_24] : memref<3x3xf32, #tpu.memory_space<smem>>
    %51 = vector.broadcast %50 : f32 to vector<2x128xf32>
    %52 = arith.mulf %49, %51 : vector<2x128xf32>
    %53 = vector.extract_strided_slice %1 {offsets = [1, 0, 0], sizes = [1, 2, 128], strides = [1, 1, 1]} : vector<3x2x128xf32> to vector<1x2x128xf32>
    %54 = vector.shape_cast %53 : vector<1x2x128xf32> to vector<2x128xf32>
    %c2_25 = arith.constant 2 : index
    %c1_26 = arith.constant 1 : index
    %55 = memref.load %arg2[%c2_25, %c1_26] : memref<3x3xf32, #tpu.memory_space<smem>>
    %56 = vector.broadcast %55 : f32 to vector<2x128xf32>
    %57 = arith.mulf %54, %56 : vector<2x128xf32>
    %58 = arith.addf %52, %57 : vector<2x128xf32>
    %59 = vector.extract_strided_slice %1 {offsets = [2, 0, 0], sizes = [1, 2, 128], strides = [1, 1, 1]} : vector<3x2x128xf32> to vector<1x2x128xf32>
    %60 = vector.shape_cast %59 : vector<1x2x128xf32> to vector<2x128xf32>
    %c2_27 = arith.constant 2 : index
    %c2_28 = arith.constant 2 : index
    %61 = memref.load %arg2[%c2_27, %c2_28] : memref<3x3xf32, #tpu.memory_space<smem>>
    %62 = vector.broadcast %61 : f32 to vector<2x128xf32>
    %63 = arith.mulf %60, %62 : vector<2x128xf32>
    %64 = arith.addf %58, %63 : vector<2x128xf32>
    %c2_29 = arith.constant 2 : index
    %65 = memref.load %arg3[%c2_29] : memref<3xf32, #tpu.memory_space<smem>>
    %66 = vector.broadcast %65 : f32 to vector<2x128xf32>
    %67 = arith.addf %64, %66 : vector<2x128xf32>
    %c0_30 = arith.constant 0 : index
    %c2_31 = arith.constant 2 : index
    %c0_32 = arith.constant 0 : index
    %c0_33 = arith.constant 0 : index
    %68 = vector.load %arg5[%c0_30, %c2_31, %c0_32, %c0_33] : memref<1x3x2x128xf32, #tpu.memory_space<vmem>>, vector<1x1x2x128xf32>
    %69 = vector.shape_cast %68 : vector<1x1x2x128xf32> to vector<2x128xf32>
    %70 = vector.shape_cast %67 : vector<2x128xf32> to vector<1x1x2x128xf32>
    tpu.vector_store %arg5[%c0_30, %c2_31, %c0_32, %c0_33], %70 {strides = array<i32>} : memref<1x3x2x128xf32, #tpu.memory_space<vmem>>, vector<1x1x2x128xf32>,
    return
  }
  func.func @transform_0(%arg0: i32, %arg1: i32) -> (i32, i32) {
    %c0_i32 = arith.constant 0 : i32
    %c0_i32_0 = arith.constant 0 : i32
    %c0_i32_1 = arith.constant 0 : i32
    return %c0_i32, %c0_i32_0 : i32, i32
  }
  func.func @transform_1(%arg0: i32, %arg1: i32) -> i32 {
    %c0_i32 = arith.constant 0 : i32
    %c0_i32_0 = arith.constant 0 : i32
    return %c0_i32 : i32
  }
  func.func @transform_2(%arg0: i32, %arg1: i32) -> (i32, i32, i32, i32) {
    %c0_i32 = arith.constant 0 : i32
    %c0_i32_0 = arith.constant 0 : i32
    %c0_i32_1 = arith.constant 0 : i32
    return %arg0, %c0_i32, %arg1, %c0_i32_0 : i32, i32, i32, i32
  }
  func.func @transform_3(%arg0: i32, %arg1: i32) -> (i32, i32, i32, i32) {
    %c0_i32 = arith.constant 0 : i32
    %c0_i32_0 = arith.constant 0 : i32
    %c0_i32_1 = arith.constant 0 : i32
    return %arg0, %c0_i32, %arg1, %c0_i32_0 : i32, i32, i32, i32
  }
}

</mosaic_0001>

<llo_original>
// kernel: tpu_custom_call.1
$region0: #{tpu_custom_call.1}
  #allocation0 [shape = 'u32[]', space=smem, size = 0x4, offset = 0x4, fixed_abs, tag = 'smem constant byte address 0x4 - core index']
  #allocation1 [shape = 'u32[72,128]{1,0:T(1,128)}', space=vmem, size = 0x9000, scoped, tag = 'internal scratch']
  %s0 = inlined_call_operand.hbm [shape: f32[3,3], index: 0, kind: input, shape index: {}]
  %s1 = inlined_call_operand.hbm [shape: f32[3], index: 1, kind: input, shape index: {}]
  %s2 = inlined_call_operand.hbm [shape: f32[2,3,2,128], index: 2, kind: input, shape index: {}]
  %s3 = inlined_call_operand.hbm [shape: f32[2,3,2,128], index: 3, kind: output, shape index: {}]
  %s4 = sld [smem:[#allocation0]]
  $region57: #{tpu_custom_call.1} parent=0
    _
  %s6 = ssub.s32 1, %s4
  %s7 = scalar_select 0, %s6, %s4
  $region1: #{tpu_custom_call.1} parent=0
    #allocation2 [shape = 'u8[2048]{0}', space=smem, size = 0x800, scoped, tag = 'input window, operand 0, single buffered']
    #allocation3 [shape = 's32[2]{0}', space=sflag, size = 0x8, scoped, tag = 'scoped memory for tpu_custom_call.1']
    #allocation4 [shape = 's32[2]{0}', space=sflag, size = 0x8, scoped, tag = 'scoped memory for tpu_custom_call.1']
    #allocation5 [shape = 's32[2]{0}', space=sflag, size = 0x8, scoped, tag = 'scoped memory for tpu_custom_call.1']
    #allocation6 [shape = 'u8[512]{0}', space=smem, size = 0x200, scoped, tag = 'input window, operand 1, single buffered']
    #allocation7 [shape = 's32[1]{0}', space=sflag, size = 0x4, scoped, tag = 'scoped memory for tpu_custom_call.1']
    #allocation8 [shape = 'u8[6144]{0}', space=vmem, size = 0x1800, scoped, tag = 'input window, operand 2']
    #allocation9 [shape = 'u8[6144]{0}', space=vmem, size = 0x1800, scoped, tag = 'output window, operand 0']
    %8 = vsyncpa [#allocation5], 0
    %9 = vsyncpa [#allocation7], 0
    %10 = vsyncpa [#allocation3], 0
    %s11 = scalar_lea.sflag [#allocation3], 1
    %12 = vsyncpa %s11, 0
    %13 = vsyncpa [#allocation4], 0
    %s14 = scalar_lea.sflag [#allocation4], 1
    %15 = vsyncpa %s14, 0
    loop: start=0, step=1, limit=4
    $region2: #{tpu_custom_call.1} parent=1 // loop_pre_header
      _
    $region3: #{tpu_custom_call.1} parent=1 // loop_header
      %s17 = sphi 0, %s21
      %p18 = scmp.ge.s32.totalorder %s17, 4
      %s24 = sphi 0, %s36
      %s25 = sphi 0, %s32
      %s26 = sphi 0, %s24
      %s27 = sphi 0, %s25
      %s28 = sphi 0, %s26
      %s29 = sphi 0, %s27
      %s37 = sphi 0, %s37
      %s39 = sphi 0, %s37
      %s40 = sphi 0, %s39
      %s54 = sphi 0, %s40
      %s58 = sphi 0, %s58
      %s60 = sphi 0, %s58
      %s61 = sphi 0, %s60
      %s75 = sphi 0, %s61
      %s83 = sphi 0, %s85
      %s86 = sphi 0, %s83
      %s87 = sphi 0, %s86
      %s103 = sphi 0, %s87
      %s111 = sphi 0, %s113
      %s114 = sphi 0, %s111
      %s115 = sphi 0, %s114
      %s131 = sphi 0, %s115
    $region4: #{tpu_custom_call.1} parent=1 // loop_header_branch
      %20 = sbr.rel (%p18) target = $region8
    $region5: #{tpu_custom_call.1} parent=1 // loop_body
      %s22 = ssub.s32 %s17, 1
      %s23 = ssub.s32 %s17, 2
      %s30 = sadd.s32 1, %s25
      %p31 = scmp.ge.s32.totalorder %s30, 1
      %s32 = scalar_select %p31, 0, %s30
      %s33 = sadd.s32 1, %s24
      %s34 = scalar_select %p31, %s33, %s24
      %p35 = scmp.ge.s32.totalorder %s34, 2
      %s36 = scalar_select %p35, 0, %s34
      %s38 = sadd.s32 %s37, 1
      %p41 = scmp.eq.s32.totalorder %s17, 1
      %p42 = scmp.ne.s32.totalorder %s37, %s39
      %p43 = scmp.eq.s32.totalorder %s17, 0
      %p44 = por %p42, %p43
      %p45 = scmp.ne.s32.totalorder %s37, %s39
      %p46 = scmp.eq.s32.totalorder %s22, 1
      %p47 = por %p45, %p46
      %p48 = scmp.ne.s32.totalorder %s39, %s40
      %p49 = scmp.eq.s32.totalorder %s22, 0
      %p50 = por %p48, %p49
      %p51 = scmp.ne.s32.totalorder %s39, %s40
      %p52 = scmp.eq.s32.totalorder %s23, 1
      %p53 = por %p51, %p52
      %p55 = scmp.ne.s32.totalorder %s40, %s54
      %p56 = scmp.eq.s32.totalorder %s23, 0
      %p57 = por %p55, %p56
      %s59 = sadd.s32 %s58, 1
      %p62 = scmp.eq.s32.totalorder %s17, 1
      %p63 = scmp.ne.s32.totalorder %s58, %s60
      %p64 = scmp.eq.s32.totalorder %s17, 0
      %p65 = por %p63, %p64
      %p66 = scmp.ne.s32.totalorder %s58, %s60
      %p67 = scmp.eq.s32.totalorder %s22, 1
      %p68 = por %p66, %p67
      %p69 = scmp.ne.s32.totalorder %s60, %s61
      %p70 = scmp.eq.s32.totalorder %s22, 0
      %p71 = por %p69, %p70
      %p72 = scmp.ne.s32.totalorder %s60, %s61
      %p73 = scmp.eq.s32.totalorder %s23, 1
      %p74 = por %p72, %p73
      %p76 = scmp.ne.s32.totalorder %s61, %s75
      %p77 = scmp.eq.s32.totalorder %s23, 0
      %p78 = por %p76, %p77
      %s79 = ssub.s32 %s24, %s36
      %s80 = ssub.s32 %s25, %s32
      %s81 = sor.u32 %s79, %s80
      %p82 = scmp.eq.s32.totalorder %s81, 0
      %s84 = sadd.s32 %s83, 1
      %s85 = scalar_select %p82, %s83, %s84
      %p88 = pneg %p82
      %p89 = scmp.eq.s32.totalorder %s17, 1
      %p90 = por %p88, %p89
      %p91 = scmp.ne.s32.totalorder %s83, %s86
      %p92 = scmp.eq.s32.totalorder %s17, 0
      %p93 = por %p91, %p92
      %p94 = scmp.ne.s32.totalorder %s83, %s86
      %p95 = scmp.eq.s32.totalorder %s22, 1
      %p96 = por %p94, %p95
      %p97 = scmp.ne.s32.totalorder %s86, %s87
      %p98 = scmp.eq.s32.totalorder %s22, 0
      %p99 = por %p97, %p98
      %p100 = scmp.ne.s32.totalorder %s86, %s87
      %p101 = scmp.eq.s32.totalorder %s23, 1
      %p102 = por %p100, %p101
      %p104 = scmp.ne.s32.totalorder %s87, %s103
      %p105 = scmp.eq.s32.totalorder %s23, 0
      %p106 = por %p104, %p105
      %s107 = ssub.s32 %s24, %s36
      %s108 = ssub.s32 %s25, %s32
      %s109 = sor.u32 %s107, %s108
      %p110 = scmp.eq.s32.totalorder %s109, 0
      %s112 = sadd.s32 %s111, 1
      %s113 = scalar_select %p110, %s111, %s112
      %p116 = pneg %p110
      %p117 = scmp.eq.s32.totalorder %s17, 1
      %p118 = por %p116, %p117
      %p119 = scmp.ne.s32.totalorder %s111, %s114
      %p120 = scmp.eq.s32.totalorder %s17, 0
      %p121 = por %p119, %p120
      %p122 = scmp.ne.s32.totalorder %s111, %s114
      %p123 = scmp.eq.s32.totalorder %s22, 1
      %p124 = por %p122, %p123
      %p125 = scmp.ne.s32.totalorder %s114, %s115
      %p126 = scmp.eq.s32.totalorder %s22, 0
      %p127 = por %p125, %p126
      %p128 = scmp.ne.s32.totalorder %s114, %s115
      %p129 = scmp.eq.s32.totalorder %s23, 1
      %p130 = por %p128, %p129
      %p132 = scmp.ne.s32.totalorder %s115, %s131
      %p133 = scmp.eq.s32.totalorder %s23, 0
      %p134 = por %p132, %p133
      %p135 = scmp.le.s32.totalorder 1, %s17
      %p136 = scmp.lt.s32.totalorder %s17, 3
      %p137 = pnand %p135, %p136
      %p138 = pneg %p137
      // Predicated region
      $region9: #{tpu_custom_call.1} parent=5 // pred_check
        _
      $region10: #{tpu_custom_call.1} parent=5 // pred_check_branch
        %140 = sbr.rel (%p137) target = $region12
      $region11: #{tpu_custom_call.1} parent=5 // pred_region
        %s141 = ssub.s32 %s17, 1
        // Predicated region
        $region13: #{tpu_custom_call.1} parent=11 // pred_check
          %p142 = pneg %p50
        $region14: #{tpu_custom_call.1} parent=11 // pred_check_branch
          %144 = sbr.rel (%p142) target = $region16
        $region15: #{tpu_custom_call.1} parent=11 // pred_region
          %146 = vsyncadd [#allocation5], 0
          %s148 = sshll.u32 %s0, 4
          %s149 = int_to_ptr.hbm [resolvable:$true] %s148
          %151 = dma.hbm_to_smem %s149, 64, [#allocation2], [#allocation5]
        $region16: #{tpu_custom_call.1} parent=11 // pred_fallthru
          _
        // Predicated region
        $region17: #{tpu_custom_call.1} parent=11 // pred_check
          %p152 = pneg %p71
        $region18: #{tpu_custom_call.1} parent=11 // pred_check_branch
          %154 = sbr.rel (%p152) target = $region20
        $region19: #{tpu_custom_call.1} parent=11 // pred_region
          %156 = vsyncadd [#allocation7], 0
          %s158 = sshll.u32 %s1, 4
          %s159 = int_to_ptr.hbm [resolvable:$true] %s158
          %161 = dma.hbm_to_smem %s159, 16, [#allocation6], [#allocation7]
        $region20: #{tpu_custom_call.1} parent=11 // pred_fallthru
          _
      $region12: #{tpu_custom_call.1} parent=5 // pred_fallthru
        _
      %p162 = scmp.lt.s32.totalorder %s17, 2
      // Predicated region
      $region21: #{tpu_custom_call.1} parent=5 // pred_check
        %p163 = pneg %p162
      $region22: #{tpu_custom_call.1} parent=5 // pred_check_branch
        %165 = sbr.rel (%p163) target = $region24
      $region23: #{tpu_custom_call.1} parent=5 // pred_region
        // Predicated region
        $region25: #{tpu_custom_call.1} parent=23 // pred_check
          %p166 = pneg %p93
        $region26: #{tpu_custom_call.1} parent=23 // pred_check_branch
          %168 = sbr.rel (%p166) target = $region28
        $region27: #{tpu_custom_call.1} parent=23 // pred_region
          %s169 = sand.u32 %s83, 1
          %s170 = scalar_lea.sflag [#allocation3], %s169
          %s171 = sand.u32 %s83, 1
          %s172 = smul.addr %s171, 6
          %s173 = scalar_lea.vmem [#allocation8], %s172
          %175 = vsyncadd %s170, 0
          %s176 = smul.addr %s24, 3
          %s177 = sadd.s32 %s25, %s176
          %s178 = smul.addr %s177, 2
          %s179 = scalar_lea.hbm %s2, %s178
          %s180 = sshll.u32 %s179, 4
          %s181 = int_to_ptr.hbm [resolvable:$true] %s180
          %s182 = sshll.u32 %s173, 4
          %s183 = int_to_ptr.vmem [resolvable:$true] %s182
          %188 = dma.hbm_to_vmem [thread:$0]  %s181, 96, %s183, %s170, 32, 32, 2
        $region28: #{tpu_custom_call.1} parent=23 // pred_fallthru
          _
      $region24: #{tpu_custom_call.1} parent=5 // pred_fallthru
        _
      %p189 = scmp.le.s32.totalorder 1, %s17
      %p190 = scmp.lt.s32.totalorder %s17, 3
      %p191 = pnand %p189, %p190
      %p192 = pneg %p191
      // Predicated region
      $region29: #{tpu_custom_call.1} parent=5 // pred_check
        _
      $region30: #{tpu_custom_call.1} parent=5 // pred_check_branch
        %194 = sbr.rel (%p191) target = $region32
      $region31: #{tpu_custom_call.1} parent=5 // pred_region
        %s195 = ssub.s32 %s17, 1
        // Predicated region
        $region33: #{tpu_custom_call.1} parent=31 // pred_check
          %p196 = pneg %p50
        $region34: #{tpu_custom_call.1} parent=31 // pred_check_branch
          %198 = sbr.rel (%p196) target = $region36
        $region35: #{tpu_custom_call.1} parent=31 // pred_region
          %200 = dma.done [#allocation5], 64
        $region36: #{tpu_custom_call.1} parent=31 // pred_fallthru
          _
        // Predicated region
        $region37: #{tpu_custom_call.1} parent=31 // pred_check
          %p201 = pneg %p71
        $region38: #{tpu_custom_call.1} parent=31 // pred_check_branch
          %203 = sbr.rel (%p201) target = $region40
        $region39: #{tpu_custom_call.1} parent=31 // pred_region
          %205 = dma.done [#allocation7], 16
        $region40: #{tpu_custom_call.1} parent=31 // pred_fallthru
          _
        %s206 = sand.u32 %s86, 1
        %s207 = scalar_lea.sflag [#allocation3], %s206
        %s208 = sand.u32 %s86, 1
        %s209 = smul.addr %s208, 6
        %s210 = scalar_lea.vmem [#allocation8], %s209
        // Predicated region
        $region41: #{tpu_custom_call.1} parent=31 // pred_check
          %p211 = pneg %p99
        $region42: #{tpu_custom_call.1} parent=31 // pred_check_branch
          %213 = sbr.rel (%p211) target = $region44
        $region43: #{tpu_custom_call.1} parent=31 // pred_region
          %215 = dma.done %s207, 96
        $region44: #{tpu_custom_call.1} parent=31 // pred_fallthru
          _
        %216 = sfence
        %p217 = pneg %p50
        %p218 = pneg %p47
        %p219 = pneg %p71
        %p220 = pneg %p68
        %s221 = sand.u32 %s86, 1
        %s222 = scalar_lea.sflag [#allocation3], %s221
        %s223 = sand.u32 %s86, 1
        %s224 = smul.addr %s223, 6
        %s225 = scalar_lea.vmem [#allocation8], %s224
        %p226 = pneg %p99
        %p227 = pneg %p96
        %p228 = pneg %p127
        %p229 = pneg %p124
        %s230 = sand.u32 %s114, 1
        %s231 = scalar_lea.sflag [#allocation4], %s230
        %s232 = sand.u32 %s114, 1
        %s233 = smul.addr %s232, 6
        %s234 = scalar_lea.vmem [#allocation9], %s233
        %v235 = vld [vmem:[%s210] sm:$0x3]
        %v236 = vld [vmem:[%s210 + $0x2] sm:$0x3]
        %v237 = vld [vmem:[%s210 + $0x4] sm:$0x3]
        %s238 = sld [smem:[#allocation2]]
        %v239 = vstv %s238
        %v240 = vmul.f32 %v235, %v239
        %s241 = sld [smem:[#allocation2 + $0x1]]
        %v242 = vstv %s241
        %v243 = vmul.f32 %v236, %v242
        %v244 = vadd.f32 %v240, %v243
        %s245 = sld [smem:[#allocation2 + $0x2]]
        %v246 = vstv %s245
        %v247 = vmul.f32 %v237, %v246
        %v248 = vadd.f32 %v244, %v247
        %s249 = sld [smem:[#allocation6]]
        %v250 = vstv %s249
        %v251 = vadd.f32 %v248, %v250
        %252 = vst [vmem:[%s234] sm:$0x3] %v251
        %s253 = sld [smem:[#allocation2 + $0x80]]
        %v254 = vstv %s253
        %v255 = vmul.f32 %v235, %v254
        %s256 = sld [smem:[#allocation2 + $0x81]]
        %v257 = vstv %s256
        %v258 = vmul.f32 %v236, %v257
        %v259 = vadd.f32 %v255, %v258
        %s260 = sld [smem:[#allocation2 + $0x82]]
        %v261 = vstv %s260
        %v262 = vmul.f32 %v237, %v261
        %v263 = vadd.f32 %v259, %v262
        %s264 = sld [smem:[#allocation6 + $0x1]]
        %v265 = vstv %s264
        %v266 = vadd.f32 %v263, %v265
        %s267 = scalar_lea.vmem %s234, 2 [#allocation9]
        %268 = vst [vmem:[%s267] sm:$0x3] %v266
        %s269 = sld [smem:[#allocation2 + $0x100]]
        %v270 = vstv %s269
        %v271 = vmul.f32 %v235, %v270
        %s272 = sld [smem:[#allocation2 + $0x101]]
        %v273 = vstv %s272
        %v274 = vmul.f32 %v236, %v273
        %v275 = vadd.f32 %v271, %v274
        %s276 = sld [smem:[#allocation2 + $0x102]]
        %v277 = vstv %s276
        %v278 = vmul.f32 %v237, %v277
        %v279 = vadd.f32 %v275, %v278
        %s280 = sld [smem:[#allocation6 + $0x2]]
        %v281 = vstv %s280
        %v282 = vadd.f32 %v279, %v281
        %s283 = scalar_lea.vmem %s234, 4 [#allocation9]
        %284 = vst [vmem:[%s283] sm:$0x3] %v282
        %s285 = sand.u32 %s114, 1
        %s286 = scalar_lea.sflag [#allocation4], %s285
        %s287 = sand.u32 %s114, 1
        %s288 = smul.addr %s287, 6
        %s289 = scalar_lea.vmem [#allocation9], %s288
        // Predicated region
        $region45: #{tpu_custom_call.1} parent=31 // pred_check
          %p290 = pneg %p124
        $region46: #{tpu_custom_call.1} parent=31 // pred_check_branch
          %292 = sbr.rel (%p290) target = $region48
        $region47: #{tpu_custom_call.1} parent=31 // pred_region
          %294 = vsyncadd %s286, 0
          %s295 = smul.addr %s26, 3
          %s296 = sadd.s32 %s27, %s295
          %s297 = smul.addr %s296, 2
          %s298 = scalar_lea.hbm %s3, %s297
          %s299 = sshll.u32 %s289, 4
          %s300 = int_to_ptr.vmem [resolvable:$true] %s299
          %s301 = sshll.u32 %s298, 4
          %s302 = int_to_ptr.hbm [resolvable:$true] %s301
          %307 = dma.vmem_to_hbm [thread:$0]  %s300, 96, %s302, %s286, 32, 32, 2
        $region48: #{tpu_custom_call.1} parent=31 // pred_fallthru
          _
      $region32: #{tpu_custom_call.1} parent=5 // pred_fallthru
        _
      %p308 = scmp.le.s32.totalorder 2, %s17
      // Predicated region
      $region49: #{tpu_custom_call.1} parent=5 // pred_check
        %p309 = pneg %p308
      $region50: #{tpu_custom_call.1} parent=5 // pred_check_branch
        %311 = sbr.rel (%p309) target = $region52
      $region51: #{tpu_custom_call.1} parent=5 // pred_region
        %s312 = ssub.s32 %s17, 2
        // Predicated region
        $region53: #{tpu_custom_call.1} parent=51 // pred_check
          %p313 = pneg %p130
        $region54: #{tpu_custom_call.1} parent=51 // pred_check_branch
          %315 = sbr.rel (%p313) target = $region56
        $region55: #{tpu_custom_call.1} parent=51 // pred_region
          %s316 = sand.u32 %s115, 1
          %s317 = scalar_lea.sflag [#allocation4], %s316
          %s318 = sand.u32 %s115, 1
          %s319 = smul.addr %s318, 6
          %s320 = scalar_lea.vmem [#allocation9], %s319
          %322 = dma.done %s317, 96
        $region56: #{tpu_custom_call.1} parent=51 // pred_fallthru
          _
      $region52: #{tpu_custom_call.1} parent=5 // pred_fallthru
        _
    $region6: #{tpu_custom_call.1} parent=1 // loop_footer
      %s21 = sadd.s32 1, %s17
    $region7: #{tpu_custom_call.1} parent=1 // loop_footer_branch
      %16 = sbr.rel target = $region3
    $region8: #{tpu_custom_call.1} parent=1 // loop_exit
      _
    %323 = vsyncpa [#allocation3], 1
    %s324 = scalar_lea.sflag [#allocation3], 1
    %325 = vsyncpa %s324, 1
    %326 = vsyncpa [#allocation4], 1
    %s327 = scalar_lea.sflag [#allocation4], 1
    %328 = vsyncpa %s327, 1
    %329 = vsyncpa [#allocation5], 1
    %s330 = scalar_lea.sflag [#allocation5], 1
    %331 = vsyncpa %s330, 1
    %332 = vsyncpa [#allocation7], 1

</llo_original>
